<compile_context>
chip_gen: v5e
topology: v5e:2x2
jax: 0.10.0
libtpu: 0.0.40
codegen_flags: <defaults>
</compile_context>

<pallas_src>
import functools

import jax
import jax.numpy as jnp
from jax import lax
from jax.experimental import pallas as pl
from jax.experimental.pallas import tpu as pltpu

LANE = 128                 # lane padding for conv2-out / classes (weights only)
IMG_BLOCK = 8              # images per grid step in the fused kernel B
CHUNK_TARGET_ROWS = 512    # per-image conv2 rows per chunk (~1.2 MB cols block)
VMEM_LIMIT = 32 << 20


def _round_up(x, m):
    return ((x + m - 1) // m) * m


def _pick_tm(m, cap=1024):
    """Row tile for the conv1 matmul: large (low per-step overhead, ~86% of
    HBM roofline at 1024) but split into >=2 tiles so the v7x megacore gets
    work on both TensorCores."""
    if m >= 2 * cap:
        return cap
    if m <= 8:
        return 8
    return _round_up((m + 1) // 2, 8)


def _pick_chunk(rows_per_img, target=CHUNK_TARGET_ROWS):
    """conv2 row-chunk size: multiple of 8, bounded, and (when cheap) an exact
    divisor of rows_per_img so no intra-image masking is needed."""
    r8 = _round_up(rows_per_img, 8)
    if r8 <= target:
        return r8
    for cr in range(target, target // 2, -8):
        if rows_per_img % cr == 0:
            return cr
    return target  # masked tail chunk (handled in-kernel)


# --------------------------- Kernel A: conv1 matmul --------------------------

def _matmul_bias_relu_kernel(x_ref, w_ref, b_ref, o_ref):
    acc = jnp.dot(x_ref[...], w_ref[...], preferred_element_type=jnp.float32)
    acc = jnp.maximum(acc + b_ref[...], 0.0)
    o_ref[...] = acc.astype(o_ref.dtype)


def matmul_bias_relu(x, w, b):
    """x:(M,K) bf16 @ w:(K,C) bf16 + b:(1,C) f32, ReLU -> (M,C) bf16.
    K and C are the TRUE sizes (full-extent last dims are legal blocks)."""
    M, K = x.shape
    C = w.shape[1]
    tm = _pick_tm(M)
    Mp = _round_up(M, tm)
    xp = jnp.pad(x, ((0, Mp - M), (0, 0)))
    # TODO(synk): on v7x use pltpu.CORE_PARALLEL on this axis (plain "parallel"
    # barely changes codegen); build the 3x3 patches in-kernel from the raw
    # NHWC tile to remove the XLA-side im2col HBM round-trip entirely.
    out = pl.pallas_call(
        _matmul_bias_relu_kernel,
        out_shape=jax.ShapeDtypeStruct((Mp, C), jnp.bfloat16),
        grid=(Mp // tm,),
        in_specs=[
            pl.BlockSpec((tm, K), lambda i: (i, 0)),
            pl.BlockSpec((K, C), lambda i: (0, 0)),
            pl.BlockSpec((1, C), lambda i: (0, 0)),
        ],
        out_specs=pl.BlockSpec((tm, C), lambda i: (i, 0)),
        compiler_params=pltpu.CompilerParams(
            dimension_semantics=("parallel",),
            vmem_limit_bytes=VMEM_LIMIT),
    )(xp, w, b)
    return out[:M]


# ----------------- Kernel B: fused conv2 + avg-pool + head -------------------

def _conv2_pool_head_kernel(cols_ref, w2_ref, b2_ref, wf_ref, bf_ref,
                            o_ref, acc_ref, *, rows_per_img, chunk_rows,
                            img_block):
    c = pl.program_id(1)

    @pl.when(c == 0)
    def _():
        acc_ref[...] = jnp.zeros_like(acc_ref)

    # conv2 for this row-chunk of IMG_BLOCK images as one bf16 MXU matmul.
    # chunk_rows % 8 == 0, so merging the leading dims is layout-preserving.
    cols = cols_ref[...].reshape(img_block * chunk_rows, -1)
    h = jnp.dot(cols, w2_ref[...], preferred_element_type=jnp.float32)
    h = jnp.maximum(h + b2_ref[...], 0.0)                # (img_block*chunk, 128)
    h = h.reshape(img_block, chunk_rows, LANE)

    if rows_per_img % chunk_rows != 0:
        # Intra-image padded rows have zero inputs, but ReLU(b2) != 0 -> mask.
        row = lax.broadcasted_iota(jnp.int32, (img_block, chunk_rows, LANE), 1)
        h = jnp.where(c * chunk_rows + row < rows_per_img, h, 0.0)

    # Global-average-pool via per-chunk accumulation (scale once at finalize).
    acc_ref[...] += jnp.sum(h, axis=1)                   # (img_block, 128) f32

    @pl.when(c == pl.num_programs(1) - 1)
    def _():
        pooled = acc_ref[...] * (1.0 / rows_per_img)     # f32 scale, exact const
        logits = jnp.dot(pooled.astype(jnp.bfloat16), wf_ref[...],
                         preferred_element_type=jnp.float32) + bf_ref[...]
        o_ref[...] = logits


def conv2_pool_head(cols2, w2, b2, wf, bf, n_img, rows_per_img):
    """cols2: (n_img*rows_per_img, 9*c1) bf16 im2col of the conv1 feature map.
    Returns (n_img, 128) f32 logits (padded class lanes included)."""
    K2 = cols2.shape[1]
    chunk_rows = _pick_chunk(rows_per_img)
    n_chunks = -(-rows_per_img // chunk_rows)
    r_pad = n_chunks * chunk_rows
    n_pad = _round_up(max(n_img, IMG_BLOCK), IMG_BLOCK)

    cols3 = cols2.reshape(n_img, rows_per_img, K2)
    cols3 = jnp.pad(cols3, ((0, n_pad - n_img),
                            (0, r_pad - rows_per_img), (0, 0)))

    kernel = functools.partial(_conv2_pool_head_kernel,
                               rows_per_img=rows_per_img,
                               chunk_rows=chunk_rows,
                               img_block=IMG_BLOCK)
    # TODO(synk): on v7x, single-buffer the constant-index-map weight operands
    # (pipeline_mode=pl.Buffered(1)) to shave a few hundred KB of VMEM.
    out = pl.pallas_call(
        kernel,
        out_shape=jax.ShapeDtypeStruct((n_pad, LANE), jnp.float32),
        grid=(n_pad // IMG_BLOCK, n_chunks),
        in_specs=[
            pl.BlockSpec((IMG_BLOCK, chunk_rows, K2), lambda i, c: (i, c, 0)),
            pl.BlockSpec((K2, LANE), lambda i, c: (0, 0)),
            pl.BlockSpec((1, LANE), lambda i, c: (0, 0)),
            pl.BlockSpec((LANE, LANE), lambda i, c: (0, 0)),
            pl.BlockSpec((1, LANE), lambda i, c: (0, 0)),
        ],
        out_specs=pl.BlockSpec((IMG_BLOCK, LANE), lambda i, c: (i, 0)),
        scratch_shapes=[pltpu.VMEM((IMG_BLOCK, LANE), jnp.float32)],
        compiler_params=pltpu.CompilerParams(
            dimension_semantics=("parallel", "arbitrary"),
            vmem_limit_bytes=VMEM_LIMIT),
    )(cols3, w2, b2, wf, bf)
    return out[:n_img]


# ----------------------------- JAX glue (im2col) ----------------------------

def _im2col(x_nhwc, kh, kw, stride, pad):
    N, H, W, C = x_nhwc.shape
    xp = jnp.pad(x_nhwc, ((0, 0), (pad, pad), (pad, pad), (0, 0)))
    OH = (H + 2 * pad - kh) // stride + 1
    OW = (W + 2 * pad - kw) // stride + 1
    cols = []
    for i in range(kh):
        for j in range(kw):
            cols.append(xp[:, i:i + stride * OH:stride, j:j + stride * OW:stride, :])
    patches = jnp.concatenate(cols, axis=-1)             # (N, OH, OW, kh*kw*C)
    return patches.reshape(N * OH * OW, kh * kw * C), OH, OW


# ----------------------------- Parameters -----------------------------------

def init_params(key, in_c, n_classes, c1=16, c2=32):
    k1, k2, k3 = jax.random.split(key, 3)

    def conv_w(k, kh, kw, ic, oc):
        fan_in = kh * kw * ic
        return jax.random.normal(k, (kh, kw, ic, oc), jnp.float32) * (2.0 / fan_in) ** 0.5

    return {
        "conv1_w": conv_w(k1, 3, 3, in_c, c1),
        "conv1_b": jnp.zeros((c1,), jnp.float32),
        "conv2_w": conv_w(k2, 3, 3, c1, c2),
        "conv2_b": jnp.zeros((c2,), jnp.float32),
        "fc_w": jax.random.normal(k3, (c2, n_classes), jnp.float32) * (1.0 / c2) ** 0.5,
        "fc_b": jnp.zeros((n_classes,), jnp.float32),
    }


def _prepare_packed_params(params):
    """conv1 stays at its true channel counts (no HBM padding); conv2-out and
    n_classes are zero-padded to 128 lanes in weights+biases (weights only --
    exact: padded lanes carry zeros through ReLU, pooling and the head)."""
    c1w = params["conv1_w"]                              # (3,3,in_c,c1)
    kh, kw, in_c, c1 = c1w.shape
    c2w = params["conv2_w"]                              # (3,3,c1,c2)
    c2 = c2w.shape[-1]
    fcw = params["fc_w"]                                 # (c2, n_classes)
    n_classes = fcw.shape[-1]

    k1 = kh * kw * in_c
    w1 = c1w.reshape(k1, c1).astype(jnp.bfloat16)
    b1 = params["conv1_b"].reshape(1, c1).astype(jnp.float32)

    k2 = kh * kw * c1
    w2 = jnp.zeros((k2, LANE), jnp.float32).at[:, :c2].set(
        c2w.reshape(k2, c2)).astype(jnp.bfloat16)
    b2 = jnp.zeros((1, LANE), jnp.float32).at[0, :c2].set(params["conv2_b"])

    wf = jnp.zeros((LANE, LANE), jnp.float32).at[:c2, :n_classes].set(fcw).astype(jnp.bfloat16)
    bf = jnp.zeros((1, LANE), jnp.float32).at[0, :n_classes].set(params["fc_b"])
    return dict(w1=w1, b1=b1, w2=w2, b2=b2, wf=wf, bf=bf,
                c1=c1, n_classes=n_classes)


# ----------------------------- Model -----------------------------------------

def backbone_forward(x_nchw, params):
    """Synthetic timm backbone: NCHW input -> (N, n_classes) logits."""
    pp = _prepare_packed_params(params)
    x = jnp.transpose(x_nchw, (0, 2, 3, 1))                          # NCHW -> NHWC
    N = x.shape[0]

    # ---- conv1: im2col glue (true K, bf16) + Pallas matmul ----
    cols1, OH1, OW1 = _im2col(x, 3, 3, stride=2, pad=1)              # (N*OH1*OW1, 9*in_c)
    h1 = matmul_bias_relu(cols1.astype(jnp.bfloat16), pp["w1"], pp["b1"])
    h1 = h1.reshape(N, OH1, OW1, pp["c1"])                           # only real channels

    # ---- conv2 + global-avg-pool + head fused in one Pallas call ----
    # TODO(synk): fold conv1 into this kernel (9 shifted-window dots on a
    # VMEM-resident NHWC tile) to remove the remaining im2col HBM round-trips.
    cols2, OH2, OW2 = _im2col(h1, 3, 3, stride=2, pad=1)             # (N*OH2*OW2, 9*c1) bf16
    logits = conv2_pool_head(cols2, pp["w2"], pp["b2"], pp["wf"], pp["bf"],
                             n_img=N, rows_per_img=OH2 * OW2)        # (N, 128) f32
    return logits[:, :pp["n_classes"]]


def _rsna24_forward(x, params):
    """Mirrors RSNA24Model.forward: handles 4-D and 5-D inputs."""
    if x.ndim == 4:
        return {"labels": backbone_forward(x, params)}
    else:
        B, L, C, H, W = x.shape
        xf = x.reshape(B * L, C, H, W)                               # flatten(0, 1)
        y = backbone_forward(xf, params)                             # (B*L, n_classes)
        y = y.reshape(B, L, -1, 3)                                   # (B, L, n_classes//3, 3)
        y = jnp.transpose(y, (0, 2, 1, 3))                           # transpose(1, 2)
        y = y.reshape(B, -1)                                         # flatten(1)
        return {"labels": y}


rsna24_forward = jax.jit(_rsna24_forward)


# ----------------------------- Main ------------------------------------------

if __name__ == "__main__":
    IN_C, N_CLASSES = 4, 15          # small but consistent (n_classes % 3 == 0)
    B, L, H, W = 2, 3, 16, 16

    key = jax.random.PRNGKey(0)
    kp, k4, k5 = jax.random.split(key, 3)
    params = init_params(kp, IN_C, N_CLASSES)

    x4 = jax.random.normal(k4, (B, IN_C, H, W), jnp.float32)         # 4-D path
    x5 = jax.random.normal(k5, (B, L, IN_C, H, W), jnp.float32)      # 5-D path

    out4 = rsna24_forward(x4, params)
    out5 = rsna24_forward(x5, params)
    jax.block_until_ready(out4["labels"])
    jax.block_until_ready(out5["labels"])

    assert out4["labels"].shape == (B, N_CLASSES)
    assert out5["labels"].shape == (B, (N_CLASSES // 3) * L * 3)
    assert bool(jnp.all(jnp.isfinite(out4["labels"])))
    assert bool(jnp.all(jnp.isfinite(out5["labels"])))
    print("KERNEL_OK")
</pallas_src>

<mosaic_0001>
module attributes {stable_mosaic.version = 11 : i64} {
  func.func @_matmul_bias_relu_kernel(%arg0: i32, %arg1: memref<64x36xbf16, #tpu.memory_space<vmem>>, %arg2: memref<36x16xbf16, #tpu.memory_space<vmem>>, %arg3: memref<1x16xf32, #tpu.memory_space<vmem>>, %arg4: memref<64x16xbf16, #tpu.memory_space<vmem>>) attributes {dimension_semantics = [#tpu.dimension_semantics<parallel>], iteration_bounds = array<i64: 2>, scalar_prefetch = 0 : i64, scratch_operands = 0 : i64, tpu.core_type = #tpu.core_type<tc>, window_params = [{transform_indices = @transform_0, window_bounds = array<i64: 64, 36>}, {pipeline_mode = #tpu.pipeline_mode<synchronous>, transform_indices = @transform_1, window_bounds = array<i64: 36, 16>}, {pipeline_mode = #tpu.pipeline_mode<synchronous>, transform_indices = @transform_2, window_bounds = array<i64: 1, 16>}, {transform_indices = @transform_3, window_bounds = array<i64: 64, 16>}]} {
    %c0 = arith.constant 0 : index
    %c0_0 = arith.constant 0 : index
    %0 = vector.load %arg1[%c0, %c0_0] : memref<64x36xbf16, #tpu.memory_space<vmem>>, vector<64x36xbf16>
    %c0_1 = arith.constant 0 : index
    %c0_2 = arith.constant 0 : index
    %1 = vector.load %arg2[%c0_1, %c0_2] : memref<36x16xbf16, #tpu.memory_space<vmem>>, vector<36x16xbf16>
    %cst = arith.constant dense<0.000000e+00> : vector<64x16xf32>
    %2 = tpu.matmul %0, %1, %cst {dimension_numbers = #tpu.dot_dimension_numbers<[1], [0], [0], [1], [0, 0, 1, 1], [], []>} : vector<64x36xbf16>, vector<36x16xbf16>, vector<64x16xf32> -> vector<64x16xf32>
    %c0_3 = arith.constant 0 : index
    %c0_4 = arith.constant 0 : index
    %3 = vector.load %arg3[%c0_3, %c0_4] : memref<1x16xf32, #tpu.memory_space<vmem>>, vector<1x16xf32>
    %4 = vector.broadcast %3 : vector<1x16xf32> to vector<64x16xf32>
    %5 = arith.addf %2, %4 : vector<64x16xf32>
    %cst_5 = arith.constant 0.000000e+00 : f32
    %6 = vector.broadcast %cst_5 : f32 to vector<64x16xf32>
    %7 = arith.maximumf %5, %6 : vector<64x16xf32>
    %8 = arith.truncf %7 : vector<64x16xf32> to vector<64x16xbf16>
    %c0_6 = arith.constant 0 : index
    %c0_7 = arith.constant 0 : index
    %9 = vector.load %arg4[%c0_6, %c0_7] : memref<64x16xbf16, #tpu.memory_space<vmem>>, vector<64x16xbf16>
    tpu.vector_store %arg4[%c0_6, %c0_7], %8 {strides = array<i32>} : memref<64x16xbf16, #tpu.memory_space<vmem>>, vector<64x16xbf16>,
    return
  }
  func.func @transform_0(%arg0: i32) -> (i32, i32) {
    %c0_i32 = arith.constant 0 : i32
    %c0_i32_0 = arith.constant 0 : i32
    return %arg0, %c0_i32 : i32, i32
  }
  func.func @transform_1(%arg0: i32) -> (i32, i32) {
    %c0_i32 = arith.constant 0 : i32
    %c0_i32_0 = arith.constant 0 : i32
    %c0_i32_1 = arith.constant 0 : i32
    return %c0_i32, %c0_i32_0 : i32, i32
  }
  func.func @transform_2(%arg0: i32) -> (i32, i32) {
    %c0_i32 = arith.constant 0 : i32
    %c0_i32_0 = arith.constant 0 : i32
    %c0_i32_1 = arith.constant 0 : i32
    return %c0_i32, %c0_i32_0 : i32, i32
  }
  func.func @transform_3(%arg0: i32) -> (i32, i32) {
    %c0_i32 = arith.constant 0 : i32
    %c0_i32_0 = arith.constant 0 : i32
    return %arg0, %c0_i32 : i32, i32
  }
}

module attributes {stable_mosaic.version = 11 : i64} {
  func.func @_conv2_pool_head_kernel(%arg0: i32, %arg1: i32, %arg2: memref<8x16x144xbf16, #tpu.memory_space<vmem>>, %arg3: memref<144x128xbf16, #tpu.memory_space<vmem>>, %arg4: memref<1x128xf32, #tpu.memory_space<vmem>>, %arg5: memref<128x128xbf16, #tpu.memory_space<vmem>>, %arg6: memref<1x128xf32, #tpu.memory_space<vmem>>, %arg7: memref<8x128xf32, #tpu.memory_space<vmem>>, %arg8: memref<8x128xf32, #tpu.memory_space<vmem>>) attributes {dimension_semantics = [#tpu.dimension_semantics<parallel>, #tpu.dimension_semantics<arbitrary>], iteration_bounds = array<i64: 1, 1>, scalar_prefetch = 0 : i64, scratch_operands = 1 : i64, tpu.core_type = #tpu.core_type<tc>, window_params = [{transform_indices = @transform_0, window_bounds = array<i64: 8, 16, 144>}, {pipeline_mode = #tpu.pipeline_mode<synchronous>, transform_indices = @transform_1, window_bounds = array<i64: 144, 128>}, {pipeline_mode = #tpu.pipeline_mode<synchronous>, transform_indices = @transform_2, window_bounds = array<i64: 1, 128>}, {pipeline_mode = #tpu.pipeline_mode<synchronous>, transform_indices = @transform_3, window_bounds = array<i64: 128, 128>}, {pipeline_mode = #tpu.pipeline_mode<synchronous>, transform_indices = @transform_4, window_bounds = array<i64: 1, 128>}, {transform_indices = @transform_5, window_bounds = array<i64: 8, 128>}]} {
    %c0_i32 = arith.constant 0 : i32
    %0 = arith.cmpi eq, %arg1, %c0_i32 : i32
    %1 = arith.extui %0 : i1 to i32
    %c0_i32_0 = arith.constant 0 : i32
    %2 = arith.cmpi ne, %1, %c0_i32_0 : i32
    scf.if %2 {
      %cst_15 = arith.constant 0.000000e+00 : f32
      %20 = vector.broadcast %cst_15 : f32 to vector<8x128xf32>
      %c0_16 = arith.constant 0 : index
      %c0_17 = arith.constant 0 : index
      %21 = vector.load %arg8[%c0_16, %c0_17] : memref<8x128xf32, #tpu.memory_space<vmem>>, vector<8x128xf32>
      tpu.vector_store %arg8[%c0_16, %c0_17], %20 {strides = array<i32>} : memref<8x128xf32, #tpu.memory_space<vmem>>, vector<8x128xf32>,
    } else {
    }
    %c0 = arith.constant 0 : index
    %c0_1 = arith.constant 0 : index
    %c0_2 = arith.constant 0 : index
    %3 = vector.load %arg2[%c0, %c0_1, %c0_2] : memref<8x16x144xbf16, #tpu.memory_space<vmem>>, vector<8x16x144xbf16>
    %4 = vector.shape_cast %3 : vector<8x16x144xbf16> to vector<128x144xbf16>
    %c0_3 = arith.constant 0 : index
    %c0_4 = arith.constant 0 : index
    %5 = vector.load %arg3[%c0_3, %c0_4] : memref<144x128xbf16, #tpu.memory_space<vmem>>, vector<144x128xbf16>
    %cst = arith.constant dense<0.000000e+00> : vector<128x128xf32>
    %6 = tpu.matmul %4, %5, %cst {dimension_numbers = #tpu.dot_dimension_numbers<[1], [0], [0], [1], [0, 0, 1, 1], [], []>} : vector<128x144xbf16>, vector<144x128xbf16>, vector<128x128xf32> -> vector<128x128xf32>
    %c0_5 = arith.constant 0 : index
    %c0_6 = arith.constant 0 : index
    %7 = vector.load %arg4[%c0_5, %c0_6] : memref<1x128xf32, #tpu.memory_space<vmem>>, vector<1x128xf32>
    %8 = vector.broadcast %7 : vector<1x128xf32> to vector<128x128xf32>
    %9 = arith.addf %6, %8 : vector<128x128xf32>
    %cst_7 = arith.constant 0.000000e+00 : f32
    %10 = vector.broadcast %cst_7 : f32 to vector<128x128xf32>
    %11 = arith.maximumf %9, %10 : vector<128x128xf32>
    %12 = vector.shape_cast %11 : vector<128x128xf32> to vector<8x16x128xf32>
    %c0_8 = arith.constant 0 : index
    %c0_9 = arith.constant 0 : index
    %13 = vector.load %arg8[%c0_8, %c0_9] : memref<8x128xf32, #tpu.memory_space<vmem>>, vector<8x128xf32>
    %cst_10 = arith.constant dense<0.000000e+00> : vector<8x128xf32>
    %14 = vector.multi_reduction <add>, %12, %cst_10 [1] : vector<8x16x128xf32> to vector<8x128xf32>
    %15 = arith.addf %13, %14 : vector<8x128xf32>
    %c0_11 = arith.constant 0 : index
    %c0_12 = arith.constant 0 : index
    %16 = vector.load %arg8[%c0_11, %c0_12] : memref<8x128xf32, #tpu.memory_space<vmem>>, vector<8x128xf32>
    tpu.vector_store %arg8[%c0_11, %c0_12], %15 {strides = array<i32>} : memref<8x128xf32, #tpu.memory_space<vmem>>, vector<8x128xf32>,
    %c0_i32_13 = arith.constant 0 : i32
    %17 = arith.cmpi eq, %arg1, %c0_i32_13 : i32
    %18 = arith.extui %17 : i1 to i32
    %c0_i32_14 = arith.constant 0 : i32
    %19 = arith.cmpi ne, %18, %c0_i32_14 : i32
    scf.if %19 {
      %c0_15 = arith.constant 0 : index
      %c0_16 = arith.constant 0 : index
      %20 = vector.load %arg8[%c0_15, %c0_16] : memref<8x128xf32, #tpu.memory_space<vmem>>, vector<8x128xf32>
      %cst_17 = arith.constant 6.250000e-02 : f32
      %21 = vector.broadcast %cst_17 : f32 to vector<8x128xf32>
      %22 = arith.mulf %20, %21 : vector<8x128xf32>
      %23 = arith.truncf %22 : vector<8x128xf32> to vector<8x128xbf16>
      %c0_18 = arith.constant 0 : index
      %c0_19 = arith.constant 0 : index
      %24 = vector.load %arg5[%c0_18, %c0_19] : memref<128x128xbf16, #tpu.memory_space<vmem>>, vector<128x128xbf16>
      %cst_20 = arith.constant dense<0.000000e+00> : vector<8x128xf32>
      %25 = tpu.matmul %23, %24, %cst_20 {dimension_numbers = #tpu.dot_dimension_numbers<[1], [0], [0], [1], [0, 0, 1, 1], [], []>} : vector<8x128xbf16>, vector<128x128xbf16>, vector<8x128xf32> -> vector<8x128xf32>
      %c0_21 = arith.constant 0 : index
      %c0_22 = arith.constant 0 : index
      %26 = vector.load %arg6[%c0_21, %c0_22] : memref<1x128xf32, #tpu.memory_space<vmem>>, vector<1x128xf32>
      %27 = vector.broadcast %26 : vector<1x128xf32> to vector<8x128xf32>
      %28 = arith.addf %25, %27 : vector<8x128xf32>
      %c0_23 = arith.constant 0 : index
      %c0_24 = arith.constant 0 : index
      %29 = vector.load %arg7[%c0_23, %c0_24] : memref<8x128xf32, #tpu.memory_space<vmem>>, vector<8x128xf32>
      tpu.vector_store %arg7[%c0_23, %c0_24], %28 {strides = array<i32>} : memref<8x128xf32, #tpu.memory_space<vmem>>, vector<8x128xf32>,
    } else {
    }
    return
  }
  func.func @transform_0(%arg0: i32, %arg1: i32) -> (i32, i32, i32) {
    %c0_i32 = arith.constant 0 : i32
    %c0_i32_0 = arith.constant 0 : i32
    return %arg0, %arg1, %c0_i32 : i32, i32, i32
  }
  func.func @transform_1(%arg0: i32, %arg1: i32) -> (i32, i32) {
    %c0_i32 = arith.constant 0 : i32
    %c0_i32_0 = arith.constant 0 : i32
    %c0_i32_1 = arith.constant 0 : i32
    return %c0_i32, %c0_i32_0 : i32, i32
  }
  func.func @transform_2(%arg0: i32, %arg1: i32) -> (i32, i32) {
    %c0_i32 = arith.constant 0 : i32
    %c0_i32_0 = arith.constant 0 : i32
    %c0_i32_1 = arith.constant 0 : i32
    return %c0_i32, %c0_i32_0 : i32, i32
  }
  func.func @transform_3(%arg0: i32, %arg1: i32) -> (i32, i32) {
    %c0_i32 = arith.constant 0 : i32
    %c0_i32_0 = arith.constant 0 : i32
    %c0_i32_1 = arith.constant 0 : i32
    return %c0_i32, %c0_i32_0 : i32, i32
  }
  func.func @transform_4(%arg0: i32, %arg1: i32) -> (i32, i32) {
    %c0_i32 = arith.constant 0 : i32
    %c0_i32_0 = arith.constant 0 : i32
    %c0_i32_1 = arith.constant 0 : i32
    return %c0_i32, %c0_i32_0 : i32, i32
  }
  func.func @transform_5(%arg0: i32, %arg1: i32) -> (i32, i32) {
    %c0_i32 = arith.constant 0 : i32
    %c0_i32_0 = arith.constant 0 : i32
    return %arg0, %c0_i32 : i32, i32
  }
}

</mosaic_0001>

<llo_original>
// kernel: _rsna24_forward.2
$region0: #{_rsna24_forward.2}
  #allocation0 [shape = 'u32[]', space=smem, size = 0x4, offset = 0x4, fixed_abs, tag = 'smem constant byte address 0x4 - core index']
  #allocation1 [shape = 'u32[72,128]{1,0:T(1,128)}', space=vmem, size = 0x9000, scoped, tag = 'internal scratch']
  %s0 = inlined_call_operand.vmem [shape: bf16[128,36], index: 0, kind: input, shape index: {}]
  %s1 = inlined_call_operand.vmem [shape: bf16[36,16], index: 1, kind: input, shape index: {}]
  %s2 = inlined_call_operand.vmem [shape: f32[1,16], index: 2, kind: input, shape index: {}]
  %s3 = inlined_call_operand.vmem [shape: bf16[128,16], index: 3, kind: output, shape index: {}]
  %s4 = sld [smem:[#allocation0]]
  $region45: #{_rsna24_forward.2} parent=0
    _
  %s6 = ssub.s32 1, %s4
  %s7 = scalar_select 0, %s6, %s4
  loop: start=0, step=1, limit=4
  $region2: #{_rsna24_forward.2} parent=0 // loop_pre_header
    _
  $region3: #{_rsna24_forward.2} parent=0 // loop_header
    %s9 = sphi 0, %s13
    %p10 = scmp.ge.s32.totalorder %s9, 4
    %s19 = sphi 0, %s21
    %s22 = sphi 0, %s19
    %s23 = sphi 0, %s22
    %s39 = sphi 0, %s23
    %s43 = sphi 0, %s43
    %s45 = sphi 0, %s43
    %s46 = sphi 0, %s45
    %s60 = sphi 0, %s46
    %s64 = sphi 0, %s64
    %s66 = sphi 0, %s64
    %s67 = sphi 0, %s66
    %s81 = sphi 0, %s67
    %s87 = sphi 0, %s89
    %s90 = sphi 0, %s87
    %s91 = sphi 0, %s90
    %s107 = sphi 0, %s91
  $region4: #{_rsna24_forward.2} parent=0 // loop_header_branch
    %12 = sbr.rel (%p10) target = $region8
  $region5: #{_rsna24_forward.2} parent=0 // loop_body
    %s14 = ssub.s32 %s9, 1
    %s15 = ssub.s32 %s9, 2
    %s16 = sadd.s32 %s9, 1
    %s17 = ssub.s32 %s9, %s16
    %p18 = scmp.eq.s32.totalorder %s17, 0
    %s20 = sadd.s32 %s19, 1
    %s21 = scalar_select %p18, %s19, %s20
    %p24 = pneg %p18
    %p25 = scmp.eq.s32.totalorder %s9, 1
    %p26 = por %p24, %p25
    %p27 = scmp.ne.s32.totalorder %s19, %s22
    %p28 = scmp.eq.s32.totalorder %s9, 0
    %p29 = por %p27, %p28
    %p30 = scmp.ne.s32.totalorder %s19, %s22
    %p31 = scmp.eq.s32.totalorder %s14, 1
    %p32 = por %p30, %p31
    %p33 = scmp.ne.s32.totalorder %s22, %s23
    %p34 = scmp.eq.s32.totalorder %s14, 0
    %p35 = por %p33, %p34
    %p36 = scmp.ne.s32.totalorder %s22, %s23
    %p37 = scmp.eq.s32.totalorder %s15, 1
    %p38 = por %p36, %p37
    %p40 = scmp.ne.s32.totalorder %s23, %s39
    %p41 = scmp.eq.s32.totalorder %s15, 0
    %p42 = por %p40, %p41
    %s44 = sadd.s32 %s43, 1
    %p47 = scmp.eq.s32.totalorder %s9, 1
    %p48 = scmp.ne.s32.totalorder %s43, %s45
    %p49 = scmp.eq.s32.totalorder %s9, 0
    %p50 = por %p48, %p49
    %p51 = scmp.ne.s32.totalorder %s43, %s45
    %p52 = scmp.eq.s32.totalorder %s14, 1
    %p53 = por %p51, %p52
    %p54 = scmp.ne.s32.totalorder %s45, %s46
    %p55 = scmp.eq.s32.totalorder %s14, 0
    %p56 = por %p54, %p55
    %p57 = scmp.ne.s32.totalorder %s45, %s46
    %p58 = scmp.eq.s32.totalorder %s15, 1
    %p59 = por %p57, %p58
    %p61 = scmp.ne.s32.totalorder %s46, %s60
    %p62 = scmp.eq.s32.totalorder %s15, 0
    %p63 = por %p61, %p62
    %s65 = sadd.s32 %s64, 1
    %p68 = scmp.eq.s32.totalorder %s9, 1
    %p69 = scmp.ne.s32.totalorder %s64, %s66
    %p70 = scmp.eq.s32.totalorder %s9, 0
    %p71 = por %p69, %p70
    %p72 = scmp.ne.s32.totalorder %s64, %s66
    %p73 = scmp.eq.s32.totalorder %s14, 1
    %p74 = por %p72, %p73
    %p75 = scmp.ne.s32.totalorder %s66, %s67
    %p76 = scmp.eq.s32.totalorder %s14, 0
    %p77 = por %p75, %p76
    %p78 = scmp.ne.s32.totalorder %s66, %s67
    %p79 = scmp.eq.s32.totalorder %s15, 1
    %p80 = por %p78, %p79
    %p82 = scmp.ne.s32.totalorder %s67, %s81
    %p83 = scmp.eq.s32.totalorder %s15, 0
    %p84 = por %p82, %p83
    %s85 = ssub.s32 %s9, %s16
    %p86 = scmp.eq.s32.totalorder %s85, 0
    %s88 = sadd.s32 %s87, 1
    %s89 = scalar_select %p86, %s87, %s88
    %p92 = pneg %p86
    %p93 = scmp.eq.s32.totalorder %s9, 1
    %p94 = por %p92, %p93
    %p95 = scmp.ne.s32.totalorder %s87, %s90
    %p96 = scmp.eq.s32.totalorder %s9, 0
    %p97 = por %p95, %p96
    %p98 = scmp.ne.s32.totalorder %s87, %s90
    %p99 = scmp.eq.s32.totalorder %s14, 1
    %p100 = por %p98, %p99
    %p101 = scmp.ne.s32.totalorder %s90, %s91
    %p102 = scmp.eq.s32.totalorder %s14, 0
    %p103 = por %p101, %p102
    %p104 = scmp.ne.s32.totalorder %s90, %s91
    %p105 = scmp.eq.s32.totalorder %s15, 1
    %p106 = por %p104, %p105
    %p108 = scmp.ne.s32.totalorder %s91, %s107
    %p109 = scmp.eq.s32.totalorder %s15, 0
    %p110 = por %p108, %p109
    %p111 = scmp.le.s32.totalorder 1, %s9
    %p112 = scmp.lt.s32.totalorder %s9, 3
    %p113 = pnand %p111, %p112
    %p114 = pneg %p113
    // Predicated region
    $region9: #{_rsna24_forward.2} parent=5 // pred_check
      _
    $region10: #{_rsna24_forward.2} parent=5 // pred_check_branch
      %116 = sbr.rel (%p113) target = $region12
    $region11: #{_rsna24_forward.2} parent=5 // pred_region
      %s117 = ssub.s32 %s9, 1
      // Predicated region
      $region13: #{_rsna24_forward.2} parent=11 // pred_check
        %p118 = pneg %p56
      $region14: #{_rsna24_forward.2} parent=11 // pred_check_branch
        %120 = sbr.rel (%p118) target = $region16
      $region15: #{_rsna24_forward.2} parent=11 // pred_region
        _
      $region16: #{_rsna24_forward.2} parent=11 // pred_fallthru
        _
      // Predicated region
      $region17: #{_rsna24_forward.2} parent=11 // pred_check
        %p121 = pneg %p77
      $region18: #{_rsna24_forward.2} parent=11 // pred_check_branch
        %123 = sbr.rel (%p121) target = $region20
      $region19: #{_rsna24_forward.2} parent=11 // pred_region
        _
      $region20: #{_rsna24_forward.2} parent=11 // pred_fallthru
        _
    $region12: #{_rsna24_forward.2} parent=5 // pred_fallthru
      _
    %p124 = scmp.lt.s32.totalorder %s9, 2
    // Predicated region
    $region21: #{_rsna24_forward.2} parent=5 // pred_check
      %p125 = pneg %p124
    $region22: #{_rsna24_forward.2} parent=5 // pred_check_branch
      %127 = sbr.rel (%p125) target = $region24
    $region23: #{_rsna24_forward.2} parent=5 // pred_region
      // Predicated region
      $region25: #{_rsna24_forward.2} parent=23 // pred_check
        %p128 = pneg %p29
      $region26: #{_rsna24_forward.2} parent=23 // pred_check_branch
        %130 = sbr.rel (%p128) target = $region28
      $region27: #{_rsna24_forward.2} parent=23 // pred_region
        %s131 = smul.u32 8, %s9
        %p132 = scmp.lt.s32.totalorder %s131, 15
        %s133 = scalar_select %p132, %s131, 15
        %s134 = smul.addr %s133, 4
        %s135 = scalar_lea.vmem %s0, %s134
        %s136 = smul.u32 8, %s9
      $region28: #{_rsna24_forward.2} parent=23 // pred_fallthru
        _
    $region24: #{_rsna24_forward.2} parent=5 // pred_fallthru
      _
    %p137 = scmp.le.s32.totalorder 1, %s9
    %p138 = scmp.lt.s32.totalorder %s9, 3
    %p139 = pnand %p137, %p138
    %p140 = pneg %p139
    // Predicated region
    $region29: #{_rsna24_forward.2} parent=5 // pred_check
      _
    $region30: #{_rsna24_forward.2} parent=5 // pred_check_branch
      %142 = sbr.rel (%p139) target = $region32
    $region31: #{_rsna24_forward.2} parent=5 // pred_region
      %s143 = ssub.s32 %s9, 1
      %s144 = smul.u32 8, %s14
      %p145 = scmp.lt.s32.totalorder %s144, 15
      %s146 = scalar_select %p145, %s144, 15
      %s147 = smul.addr %s146, 4
      %s148 = scalar_lea.vmem %s0, %s147
      %p149 = pneg %p35
      %p150 = pneg %p32
      %p151 = pneg %p56
      %p152 = pneg %p53
      %p153 = pneg %p77
      %p154 = pneg %p74
      %p155 = pneg %p103
      %p156 = pneg %p100
      %s157 = smul.u32 8, %s14
      %p158 = scmp.lt.s32.totalorder %s157, 15
      %s159 = scalar_select %p158, %s157, 15
      %s160 = smul.addr %s159, 4
      %s161 = scalar_lea.vmem %s3, %s160
      %s162 = smul.u32 8, %s14
      %p163 = scmp.lt.s32.totalorder %s162, 15
      %s164 = scalar_select %p163, %s162, 15
      %s165 = smul.addr %s164, 4
      %s166 = scalar_lea.vmem %s0, %s165
      %s167 = smul.u32 8, %s14
      %s168 = smul.u32 8, %s14
      %p169 = scmp.lt.s32.totalorder %s168, 15
      %s170 = scalar_select %p169, %s168, 15
      %s171 = smul.addr %s170, 4
      %s172 = scalar_lea.vmem %s3, %s171
      %s173 = smul.u32 8, %s14
      %v175 = vld [vmem:[%s166] sm:$0xf]
      %v176 = vld [vmem:[%s166 + $0x4] sm:$0xf]
      %v177 = vld [vmem:[%s166 + $0x8] sm:$0xf]
      %v178 = vld [vmem:[%s166 + $0xc] sm:$0xf]
      %v179 = vld [vmem:[%s166 + $0x10] sm:$0xf]
      %v180 = vld [vmem:[%s166 + $0x14] sm:$0xf]
      %v181 = vld [vmem:[%s166 + $0x18] sm:$0xf]
      %v182 = vld [vmem:[%s166 + $0x1c] sm:$0xf]
      %v183 = vld [vmem:[%s1] sm:$0xf]
      %v184 = vld [vmem:[%s1 + $0x4] sm:$0xf]
      %v185 = vld [vmem:[%s1 + $0x8] sm:$0xf]
      %v186 = vld [vmem:[%s1 + $0xc] sm:$0xf]
      %v187 = vld [vmem:[%s1 + $0x10] sm:$0x3]
      %v188 = vld [vmem:[%s2] sm:$0x1]
      %v190 = vperm.slane %v188, 0
      %v200 = vunpack.c.l.b16 %v175
      %v201 = vunpack.c.l.b16 %v176
      %v202 = vunpack.c.l.b16 %v177
      %v203 = vunpack.c.l.b16 %v178
      %v204 = vunpack.c.l.b16 %v179
      %v205 = vunpack.c.l.b16 %v180
      %v206 = vunpack.c.l.b16 %v181
      %v207 = vunpack.c.l.b16 %v182
      %v208 = vpack.c.b16 %v201, %v200
      %v209 = vpack.c.b16 %v203, %v202
      %v210 = vpack.c.b16 %v205, %v204
      %v211 = vpack.c.b16 %v207, %v206
      %v217 = vunpack.c.l.b16 %v183
      %v218 = vunpack.c.l.b16 %v184
      %v219 = vunpack.c.l.b16 %v185
      %v220 = vunpack.c.l.b16 %v186
      %v221 = vunpack.c.l.b16 %v187
      %v222 = vpack.c.b16 %v218, %v217
      %v223 = vpack.c.b16 %v220, %v219
      %v224 = vpack.c.b16 %v221, %v221
      %vm227 = vcmask 293888
      %v229 = vsel %vm227, %v208, 0
      %v232 = vsel %vm227, %v209, 0
      %v235 = vsel %vm227, %v210, 0
      %v238 = vsel %vm227, %v211, 0
      %vm240 = vcmask 1041408
      %v242 = vsel %vm240, %v224, 0
      %244 = vmatpush.bf16.msra.mxu0 0
      %245 = vmatpush.bf16.msra.mxu0 0
      %246 = vmatpush.bf16.msra.mxu0 0
      %247 = vmatpush.bf16.msra.mxu0 0
      %248 = vmatpush.bf16.msra.mxu0 0
      %249 = vmatpush.bf16.msra.mxu0 %v242
      %250 = vmatpush.bf16.msra.mxu0 %v223
      %251 = vmatpush.bf16.msra.mxu0 %v222
      %252 = vmatmul.bf16.gmra.mxu0 %v229
      %v253 = vpop.f32.mrf.mxu0
      %v254 = vadd.f32 %v190, %v253
      %v255 = vpop.f32.mrf.mxu0
      %v256 = vadd.f32 %v190, %v255
      %257 = vmatmul.bf16.gmra.mxu0 %v232
      %v258 = vpop.f32.mrf.mxu0
      %v259 = vadd.f32 %v190, %v258
      %v260 = vpop.f32.mrf.mxu0
      %v261 = vadd.f32 %v190, %v260
      %262 = vmatmul.bf16.gmra.mxu0 %v235
      %v263 = vpop.f32.mrf.mxu0
      %v264 = vadd.f32 %v190, %v263
      %v265 = vpop.f32.mrf.mxu0
      %v266 = vadd.f32 %v190, %v265
      %267 = vmatmul.bf16.gmra.mxu0 %v238
      %v268 = vpop.f32.mrf.mxu0
      %v269 = vadd.f32 %v190, %v268
      %v270 = vpop.f32.mrf.mxu0
      %v271 = vadd.f32 %v190, %v270
      %272 = vdwg.mxu0
      %v273 = vmax.f32 %v254, 0.0
      %v274 = vmax.f32 %v256, 0.0
      %v275 = vmax.f32 %v259, 0.0
      %v276 = vmax.f32 %v261, 0.0
      %v277 = vmax.f32 %v264, 0.0
      %v278 = vmax.f32 %v266, 0.0
      %v279 = vmax.f32 %v269, 0.0
      %v280 = vmax.f32 %v271, 0.0
      %v281 = vpack.c.bf16 %v273, %v273
      %v282 = vpack.c.bf16 %v274, %v274
      %v283 = vpack.c.bf16 %v275, %v275
      %v284 = vpack.c.bf16 %v276, %v276
      %v285 = vpack.c.bf16 %v277, %v277
      %v286 = vpack.c.bf16 %v278, %v278
      %v287 = vpack.c.bf16 %v279, %v279
      %v288 = vpack.c.bf16 %v280, %v280
      %vm289 = vcmask 125952
      %290 = vst.msk [vmem:[%s172] sm:$0xf] %vm289, %v281
      %291 = vst.msk [vmem:[%s172 + $0x4] sm:$0xf] %vm289, %v282
      %292 = vst.msk [vmem:[%s172 + $0x8] sm:$0xf] %vm289, %v283
      %293 = vst.msk [vmem:[%s172 + $0xc] sm:$0xf] %vm289, %v284
      %294 = vst.msk [vmem:[%s172 + $0x10] sm:$0xf] %vm289, %v285
      %295 = vst.msk [vmem:[%s172 + $0x14] sm:$0xf] %vm289, %v286
      %296 = vst.msk [vmem:[%s172 + $0x18] sm:$0xf] %vm289, %v287
      %297 = vst.msk [vmem:[%s172 + $0x1c] sm:$0xf] %vm289, %v288
      %s298 = smul.u32 8, %s14
      %p299 = scmp.lt.s32.totalorder %s298, 15
      %s300 = scalar_select %p299, %s298, 15
      %s301 = smul.addr %s300, 4
      %s302 = scalar_lea.vmem %s3, %s301
      // Predicated region
      $region33: #{_rsna24_forward.2} parent=31 // pred_check
        %p303 = pneg %p100
      $region34: #{_rsna24_forward.2} parent=31 // pred_check_branch
        %305 = sbr.rel (%p303) target = $region36
      $region35: #{_rsna24_forward.2} parent=31 // pred_region
        %s306 = smul.u32 8, %s14
      $region36: #{_rsna24_forward.2} parent=31 // pred_fallthru
        _
    $region32: #{_rsna24_forward.2} parent=5 // pred_fallthru
      _
    %p307 = scmp.le.s32.totalorder 2, %s9
    // Predicated region
    $region37: #{_rsna24_forward.2} parent=5 // pred_check
      %p308 = pneg %p307
    $region38: #{_rsna24_forward.2} parent=5 // pred_check_branch
      %310 = sbr.rel (%p308) target = $region40
    $region39: #{_rsna24_forward.2} parent=5 // pred_region
      %s311 = ssub.s32 %s9, 2
      // Predicated region
      $region41: #{_rsna24_forward.2} parent=39 // pred_check
        %p312 = pneg %p106
      $region42: #{_rsna24_forward.2} parent=39 // pred_check_branch
        %314 = sbr.rel (%p312) target = $region44
      $region43: #{_rsna24_forward.2} parent=39 // pred_region
        %s315 = smul.u32 8, %s15
        %p316 = scmp.lt.s32.totalorder %s315, 15
        %s317 = scalar_select %p316, %s315, 15
        %s318 = smul.addr %s317, 4
        %s319 = scalar_lea.vmem %s3, %s318
      $region44: #{_rsna24_forward.2} parent=39 // pred_fallthru
        _
    $region40: #{_rsna24_forward.2} parent=5 // pred_fallthru
      _
  $region6: #{_rsna24_forward.2} parent=0 // loop_footer
    %s13 = sadd.s32 1, %s9
  $region7: #{_rsna24_forward.2} parent=0 // loop_footer_branch
    %8 = sbr.rel target = $region3
  $region8: #{_rsna24_forward.2} parent=0 // loop_exit
    _

// kernel: _rsna24_forward.3
$region0: #{_rsna24_forward.3}
  #allocation0 [shape = 'u32[]', space=smem, size = 0x4, offset = 0x4, fixed_abs, tag = 'smem constant byte address 0x4 - core index']
  #allocation1 [shape = 'u32[72,128]{1,0:T(1,128)}', space=vmem, size = 0x9000, scoped, tag = 'internal scratch']
  #allocation2 [shape = 'f32[8,128]{1,0:T(8,128)}', space=vmem, size = 0x1000, scoped, tag = 'scratch operand']
  %s0 = inlined_call_operand.vmem [shape: bf16[8,16,144], index: 0, kind: input, shape index: {}]
  %s1 = inlined_call_operand.vmem [shape: bf16[144,128], index: 1, kind: input, shape index: {}]
  %s2 = inlined_call_operand.vmem [shape: f32[1,128], index: 2, kind: input, shape index: {}]
  %s3 = inlined_call_operand.vmem [shape: bf16[128,128], index: 3, kind: input, shape index: {}]
  %s4 = inlined_call_operand.vmem [shape: f32[1,128], index: 4, kind: input, shape index: {}]
  %s5 = inlined_call_operand.vmem [shape: f32[8,128], index: 5, kind: output, shape index: {}]
  %s6 = sld [smem:[#allocation0]]
  $region38: #{_rsna24_forward.3} parent=0
    _
  %s8 = ssub.s32 1, %s6
  %s9 = scalar_select 0, %s8, %s6
  // Predicated region
  $region2: #{_rsna24_forward.3} parent=0 // pred_check
    _
  $region3: #{_rsna24_forward.3} parent=0 // pred_check_branch
    %11 = sbr.rel (0) target = $region5
  $region4: #{_rsna24_forward.3} parent=0 // pred_region
    _
  $region5: #{_rsna24_forward.3} parent=0 // pred_fallthru
    _
  // Predicated region
  $region6: #{_rsna24_forward.3} parent=0 // pred_check
    _
  $region7: #{_rsna24_forward.3} parent=0 // pred_check_branch
    %13 = sbr.rel (0) target = $region9
  $region8: #{_rsna24_forward.3} parent=0 // pred_region
    _
  $region9: #{_rsna24_forward.3} parent=0 // pred_fallthru
    _
  // Predicated region
  $region10: #{_rsna24_forward.3} parent=0 // pred_check
    _
  $region11: #{_rsna24_forward.3} parent=0 // pred_check_branch
    %15 = sbr.rel (0) target = $region13
  $region12: #{_rsna24_forward.3} parent=0 // pred_region
    _
  $region13: #{_rsna24_forward.3} parent=0 // pred_fallthru
    _
  // Predicated region
  $region14: #{_rsna24_forward.3} parent=0 // pred_check
    _
  $region15: #{_rsna24_forward.3} parent=0 // pred_check_branch
    %17 = sbr.rel (0) target = $region17
  $region16: #{_rsna24_forward.3} parent=0 // pred_region
    _
  $region17: #{_rsna24_forward.3} parent=0 // pred_fallthru
    _
  // Predicated region
  $region18: #{_rsna24_forward.3} parent=0 // pred_check
    _
  $region19: #{_rsna24_forward.3} parent=0 // pred_check_branch
    %19 = sbr.rel (0) target = $region21
  $region20: #{_rsna24_forward.3} parent=0 // pred_region
    _
  $region21: #{_rsna24_forward.3} parent=0 // pred_fallthru
    _
  %p21 = scmp.eq.s32.totalorder 0, 0
  // Predicated region
  $region22: #{_rsna24_forward.3} parent=0 // pred_check
    %p22 = pneg %p21
  $region23: #{_rsna24_forward.3} parent=0 // pred_check_branch
    %24 = sbr.rel (%p22) target = $region25
  $region24: #{_rsna24_forward.3} parent=0 // pred_region
    %25 = vst [vmem:[#allocation2] sm:$0xff] 0.0
  $region25: #{_rsna24_forward.3} parent=0 // pred_fallthru
    _
  %v26 = vld [vmem:[%s0] sm:$0xff]
  %v27 = vld [vmem:[%s0 + $0x8] sm:$0xff]
  %v28 = vld [vmem:[%s0 + $0x10] sm:$0xff]
  %v29 = vld [vmem:[%s0 + $0x18] sm:$0xff]
  %v30 = vld [vmem:[%s0 + $0x20] sm:$0xff]
  %v31 = vld [vmem:[%s0 + $0x28] sm:$0xff]
  %v32 = vld [vmem:[%s0 + $0x30] sm:$0xff]
  %v33 = vld [vmem:[%s0 + $0x38] sm:$0xff]
  %v34 = vld [vmem:[%s0 + $0x40] sm:$0xff]
  %v35 = vld [vmem:[%s0 + $0x48] sm:$0xff]
  %v36 = vld [vmem:[%s0 + $0x50] sm:$0xff]
  %v37 = vld [vmem:[%s0 + $0x58] sm:$0xff]
  %v38 = vld [vmem:[%s0 + $0x60] sm:$0xff]
  %v39 = vld [vmem:[%s0 + $0x68] sm:$0xff]
  %v40 = vld [vmem:[%s0 + $0x70] sm:$0xff]
  %v41 = vld [vmem:[%s0 + $0x78] sm:$0xff]
  %v42 = vld [vmem:[%s1] sm:$0xf]
  %v43 = vld [vmem:[%s1 + $0x4] sm:$0xf]
  %v44 = vld [vmem:[%s1 + $0x8] sm:$0xf]
  %v45 = vld [vmem:[%s1 + $0xc] sm:$0xf]
  %v46 = vld [vmem:[%s1 + $0x10] sm:$0xf]
  %v47 = vld [vmem:[%s1 + $0x14] sm:$0xf]
  %v48 = vld [vmem:[%s1 + $0x18] sm:$0xf]
  %v49 = vld [vmem:[%s1 + $0x1c] sm:$0xf]
  %v50 = vld [vmem:[%s1 + $0x20] sm:$0xf]
  %v51 = vld [vmem:[%s1 + $0x24] sm:$0xf]
  %v52 = vld [vmem:[%s1 + $0x28] sm:$0xf]
  %v53 = vld [vmem:[%s1 + $0x2c] sm:$0xf]
  %v54 = vld [vmem:[%s1 + $0x30] sm:$0xf]
  %v55 = vld [vmem:[%s1 + $0x34] sm:$0xf]
  %v56 = vld [vmem:[%s1 + $0x38] sm:$0xf]
  %v57 = vld [vmem:[%s1 + $0x3c] sm:$0xf]
  %v58 = vld [vmem:[%s1 + $0x40] sm:$0xf]
  %v59 = vld [vmem:[%s1 + $0x44] sm:$0xf]
  %v60 = vld [vmem:[%s2] sm:$0x1]
  %v62 = vperm.slane %v60, 0
  %v80 = vunpack.c.l.b16 %v26
  %v81 = vunpack.c.h.b16 %v26
  %v82 = vunpack.c.l.b16 %v27
  %v83 = vunpack.c.h.b16 %v27
  %v84 = vunpack.c.l.b16 %v28
  %v85 = vunpack.c.h.b16 %v28
  %v86 = vunpack.c.l.b16 %v29
  %v87 = vunpack.c.h.b16 %v29
  %v88 = vunpack.c.l.b16 %v30
  %v89 = vunpack.c.h.b16 %v30
  %v90 = vunpack.c.l.b16 %v31
  %v91 = vunpack.c.h.b16 %v31
  %v92 = vunpack.c.l.b16 %v32
  %v93 = vunpack.c.h.b16 %v32
  %v94 = vunpack.c.l.b16 %v33
  %v95 = vunpack.c.h.b16 %v33
  %v96 = vunpack.c.l.b16 %v34
  %v97 = vunpack.c.h.b16 %v34
  %v98 = vunpack.c.l.b16 %v35
  %v99 = vunpack.c.h.b16 %v35
  %v100 = vunpack.c.l.b16 %v36
  %v101 = vunpack.c.h.b16 %v36
  %v102 = vunpack.c.l.b16 %v37
  %v103 = vunpack.c.h.b16 %v37
  %v104 = vunpack.c.l.b16 %v38
  %v105 = vunpack.c.h.b16 %v38
  %v106 = vunpack.c.l.b16 %v39
  %v107 = vunpack.c.h.b16 %v39
  %v108 = vunpack.c.l.b16 %v40
  %v109 = vunpack.c.h.b16 %v40
  %v110 = vunpack.c.l.b16 %v41
  %v111 = vunpack.c.h.b16 %v41
  %v112 = vpack.c.b16 %v82, %v80
  %v113 = vpack.c.b16 %v83, %v81
  %v114 = vpack.c.b16 %v86, %v84
  %v115 = vpack.c.b16 %v87, %v85
  %v116 = vpack.c.b16 %v90, %v88
  %v117 = vpack.c.b16 %v91, %v89
  %v118 = vpack.c.b16 %v94, %v92
  %v119 = vpack.c.b16 %v95, %v93
  %v120 = vpack.c.b16 %v98, %v96
  %v121 = vpack.c.b16 %v99, %v97
  %v122 = vpack.c.b16 %v102, %v100
  %v123 = vpack.c.b16 %v103, %v101
  %v124 = vpack.c.b16 %v106, %v104
  %v125 = vpack.c.b16 %v107, %v105
  %v126 = vpack.c.b16 %v110, %v108
  %v127 = vpack.c.b16 %v111, %v109
  %v154 = vunpack.c.l.b16 %v42
  %v155 = vunpack.c.l.b16 %v43
  %v156 = vunpack.c.l.b16 %v44
  %v157 = vunpack.c.l.b16 %v45
  %v158 = vunpack.c.l.b16 %v46
  %v159 = vunpack.c.l.b16 %v47
  %v160 = vunpack.c.l.b16 %v48
  %v161 = vunpack.c.l.b16 %v49
  %v162 = vunpack.c.l.b16 %v50
  %v163 = vunpack.c.l.b16 %v51
  %v164 = vunpack.c.l.b16 %v52
  %v165 = vunpack.c.l.b16 %v53
  %v166 = vunpack.c.l.b16 %v54
  %v167 = vunpack.c.l.b16 %v55
  %v168 = vunpack.c.l.b16 %v56
  %v169 = vunpack.c.l.b16 %v57
  %v170 = vunpack.c.l.b16 %v58
  %v171 = vunpack.c.l.b16 %v59
  %v172 = vpack.c.b16 %v155, %v154
  %v173 = vpack.c.b16 %v157, %v156
  %v174 = vpack.c.b16 %v159, %v158
  %v175 = vpack.c.b16 %v161, %v160
  %v176 = vpack.c.b16 %v163, %v162
  %v177 = vpack.c.b16 %v165, %v164
  %v178 = vpack.c.b16 %v167, %v166
  %v179 = vpack.c.b16 %v169, %v168
  %v180 = vpack.c.b16 %v171, %v170
  %vm190 = vcmask 130048
  %v192 = vsel %vm190, %v113, 0
  %v195 = vsel %vm190, %v115, 0
  %v198 = vsel %vm190, %v117, 0
  %v201 = vsel %vm190, %v119, 0
  %v204 = vsel %vm190, %v121, 0
  %v207 = vsel %vm190, %v123, 0
  %v210 = vsel %vm190, %v125, 0
  %v213 = vsel %vm190, %v127, 0
  %215 = vmatpush.bf16.msra.mxu0 %v179
  %216 = vmatpush.bf16.msra.mxu0 %v178
  %217 = vmatpush.bf16.msra.mxu0 %v177
  %218 = vmatpush.bf16.msra.mxu0 %v176
  %219 = vmatpush.bf16.msra.mxu0 %v175
  %220 = vmatpush.bf16.msra.mxu0 %v174
  %221 = vmatpush.bf16.msra.mxu0 %v173
  %222 = vmatpush.bf16.msra.mxu0 %v172
  %223 = vmatmul.bf16.gmra.mxu0 %v112
  %v224 = vpop.f32.mrf.mxu0
  %v225 = vadd.f32 %v62, %v224
  %v226 = vpop.f32.mrf.mxu0
  %v227 = vadd.f32 %v62, %v226
  %228 = vmatmul.bf16.gmra.mxu0 %v114
  %v229 = vpop.f32.mrf.mxu0
  %v230 = vadd.f32 %v62, %v229
  %v231 = vpop.f32.mrf.mxu0
  %v232 = vadd.f32 %v62, %v231
  %233 = vmatmul.bf16.gmra.mxu0 %v116
  %v234 = vpop.f32.mrf.mxu0
  %v235 = vadd.f32 %v62, %v234
  %v236 = vpop.f32.mrf.mxu0
  %v237 = vadd.f32 %v62, %v236
  %238 = vmatmul.bf16.gmra.mxu0 %v118
  %v239 = vpop.f32.mrf.mxu0
  %v240 = vadd.f32 %v62, %v239
  %v241 = vpop.f32.mrf.mxu0
  %v242 = vadd.f32 %v62, %v241
  %243 = vmatmul.bf16.gmra.mxu0 %v120
  %v244 = vpop.f32.mrf.mxu0
  %v245 = vadd.f32 %v62, %v244
  %v246 = vpop.f32.mrf.mxu0
  %v247 = vadd.f32 %v62, %v246
  %248 = vmatmul.bf16.gmra.mxu0 %v122
  %v249 = vpop.f32.mrf.mxu0
  %v250 = vadd.f32 %v62, %v249
  %v251 = vpop.f32.mrf.mxu0
  %v252 = vadd.f32 %v62, %v251
  %253 = vmatmul.bf16.gmra.mxu0 %v124
  %v254 = vpop.f32.mrf.mxu0
  %v255 = vadd.f32 %v62, %v254
  %v256 = vpop.f32.mrf.mxu0
  %v257 = vadd.f32 %v62, %v256
  %258 = vmatmul.bf16.gmra.mxu0 %v126
  %v259 = vpop.f32.mrf.mxu0
  %v260 = vadd.f32 %v62, %v259
  %v261 = vpop.f32.mrf.mxu0
  %v262 = vadd.f32 %v62, %v261
  %263 = vdwg.mxu0
  %264 = vmatpush.bf16.msra.mxu0 0
  %265 = vmatpush.bf16.msra.mxu0 0
  %266 = vmatpush.bf16.msra.mxu0 0
  %267 = vmatpush.bf16.msra.mxu0 0
  %268 = vmatpush.bf16.msra.mxu0 0
  %269 = vmatpush.bf16.msra.mxu0 0
  %270 = vmatpush.bf16.msra.mxu0 0
  %271 = vmatpush.bf16.msra.mxu0 %v180
  %272 = vmatmul.bf16.gmra.mxu0 %v192
  %v273 = vpop.f32.mrf.mxu0
  %v274 = vadd.f32 %v225, %v273
  %v275 = vpop.f32.mrf.mxu0
  %v276 = vadd.f32 %v227, %v275
  %277 = vmatmul.bf16.gmra.mxu0 %v195
  %v278 = vpop.f32.mrf.mxu0
  %v279 = vadd.f32 %v230, %v278
  %v280 = vpop.f32.mrf.mxu0
  %v281 = vadd.f32 %v232, %v280
  %282 = vmatmul.bf16.gmra.mxu0 %v198
  %v283 = vpop.f32.mrf.mxu0
  %v284 = vadd.f32 %v235, %v283
  %v285 = vpop.f32.mrf.mxu0
  %v286 = vadd.f32 %v237, %v285
  %287 = vmatmul.bf16.gmra.mxu0 %v201
  %v288 = vpop.f32.mrf.mxu0
  %v289 = vadd.f32 %v240, %v288
  %v290 = vpop.f32.mrf.mxu0
  %v291 = vadd.f32 %v242, %v290
  %292 = vmatmul.bf16.gmra.mxu0 %v204
  %v293 = vpop.f32.mrf.mxu0
  %v294 = vadd.f32 %v245, %v293
  %v295 = vpop.f32.mrf.mxu0
  %v296 = vadd.f32 %v247, %v295
  %297 = vmatmul.bf16.gmra.mxu0 %v207
  %v298 = vpop.f32.mrf.mxu0
  %v299 = vadd.f32 %v250, %v298
  %v300 = vpop.f32.mrf.mxu0
  %v301 = vadd.f32 %v252, %v300
  %302 = vmatmul.bf16.gmra.mxu0 %v210
  %v303 = vpop.f32.mrf.mxu0
  %v304 = vadd.f32 %v255, %v303
  %v305 = vpop.f32.mrf.mxu0
  %v306 = vadd.f32 %v257, %v305
  %307 = vmatmul.bf16.gmra.mxu0 %v213
  %v308 = vpop.f32.mrf.mxu0
  %v309 = vadd.f32 %v260, %v308
  %v310 = vpop.f32.mrf.mxu0
  %v311 = vadd.f32 %v262, %v310
  %312 = vdwg.mxu0
  %v313 = vmax.f32 %v274, 0.0
  %v314 = vmax.f32 %v276, 0.0
  %v315 = vmax.f32 %v279, 0.0
  %v316 = vmax.f32 %v281, 0.0
  %v317 = vmax.f32 %v284, 0.0
  %v318 = vmax.f32 %v286, 0.0
  %v319 = vmax.f32 %v289, 0.0
  %v320 = vmax.f32 %v291, 0.0
  %v321 = vmax.f32 %v294, 0.0
  %v322 = vmax.f32 %v296, 0.0
  %v323 = vmax.f32 %v299, 0.0
  %v324 = vmax.f32 %v301, 0.0
  %v325 = vmax.f32 %v304, 0.0
  %v326 = vmax.f32 %v306, 0.0
  %v327 = vmax.f32 %v309, 0.0
  %v328 = vmax.f32 %v311, 0.0
  %v329 = vld [vmem:[#allocation2] sm:$0xff]
  %v330 = vadd.f32 %v313, %v314
  %v331 = vrot.slane %v330, 4
  %v332 = vadd.f32 %v330, %v331
  %v333 = vrot.slane %v332, 2
  %v334 = vadd.f32 %v332, %v333
  %v335 = vrot.slane %v334, 1
  %v336 = vadd.f32 %v334, %v335
  %v337 = vadd.f32 %v315, %v316
  %v338 = vrot.slane %v337, 4
  %v339 = vadd.f32 %v337, %v338
  %v340 = vrot.slane %v339, 2
  %v341 = vadd.f32 %v339, %v340
  %v342 = vrot.slane %v341, 1
  %v343 = vadd.f32 %v341, %v342
  %v344 = vadd.f32 %v317, %v318
  %v345 = vrot.slane %v344, 4
  %v346 = vadd.f32 %v344, %v345
  %v347 = vrot.slane %v346, 2
  %v348 = vadd.f32 %v346, %v347
  %v349 = vrot.slane %v348, 1
  %v350 = vadd.f32 %v348, %v349
  %v351 = vadd.f32 %v319, %v320
  %v352 = vrot.slane %v351, 4
  %v353 = vadd.f32 %v351, %v352
  %v354 = vrot.slane %v353, 2
  %v355 = vadd.f32 %v353, %v354
  %v356 = vrot.slane %v355, 1
  %v357 = vadd.f32 %v355, %v356
  %v358 = vadd.f32 %v321, %v322
  %v359 = vrot.slane %v358, 4
  %v360 = vadd.f32 %v358, %v359
  %v361 = vrot.slane %v360, 2
  %v362 = vadd.f32 %v360, %v361
  %v363 = vrot.slane %v362, 1
  %v364 = vadd.f32 %v362, %v363
  %v365 = vadd.f32 %v323, %v324
  %v366 = vrot.slane %v365, 4
  %v367 = vadd.f32 %v365, %v366
  %v368 = vrot.slane %v367, 2
  %v369 = vadd.f32 %v367, %v368
  %v370 = vrot.slane %v369, 1
  %v371 = vadd.f32 %v369, %v370
  %v372 = vadd.f32 %v325, %v326
  %v373 = vrot.slane %v372, 4
  %v374 = vadd.f32 %v372, %v373
  %v375 = vrot.slane %v374, 2
  %v376 = vadd.f32 %v374, %v375
  %v377 = vrot.slane %v376, 1
  %v378 = vadd.f32 %v376, %v377
  %v379 = vadd.f32 %v327, %v328
  %v380 = vrot.slane %v379, 4
  %v381 = vadd.f32 %v379, %v380
  %v382 = vrot.slane %v381, 2
  %v383 = vadd.f32 %v381, %v382
  %v384 = vrot.slane %v383, 1
  %v385 = vadd.f32 %v383, %v384
  %vm394 = vcmask 1041409
  %v395 = vsel %vm394, %v343, %v336
  %vm396 = vcmask 1042434
  %v397 = vsel %vm396, %v350, %v395
  %vm398 = vcmask 1043459
  %v399 = vsel %vm398, %v357, %v397
  %vm400 = vcmask 1044484
  %v401 = vsel %vm400, %v364, %v399
  %vm402 = vcmask 1045509
  %v403 = vsel %vm402, %v371, %v401
  %vm404 = vcmask 1046534
  %v405 = vsel %vm404, %v378, %v403
  %vm406 = vcmask 1047559
  %v407 = vsel %vm406, %v385, %v405
  %v409 = vadd.f32 %v329, %v407
  %410 = vst [vmem:[#allocation2] sm:$0xff] %v409
  // Predicated region
  $region26: #{_rsna24_forward.3} parent=0 // pred_check
    %p411 = pneg %p21
  $region27: #{_rsna24_forward.3} parent=0 // pred_check_branch
    %413 = sbr.rel (%p411) target = $region29
  $region28: #{_rsna24_forward.3} parent=0 // pred_region
    %v414 = vld [vmem:[#allocation2] sm:$0xff]
    %v415 = vmul.f32 %v414, 0.0625
    %v416 = vpack.c.bf16 %v415, %v415
    %v417 = vld [vmem:[%s3] sm:$0xf]
    %v418 = vld [vmem:[%s3 + $0x4] sm:$0xf]
    %v419 = vld [vmem:[%s3 + $0x8] sm:$0xf]
    %v420 = vld [vmem:[%s3 + $0xc] sm:$0xf]
    %v421 = vld [vmem:[%s3 + $0x10] sm:$0xf]
    %v422 = vld [vmem:[%s3 + $0x14] sm:$0xf]
    %v423 = vld [vmem:[%s3 + $0x18] sm:$0xf]
    %v424 = vld [vmem:[%s3 + $0x1c] sm:$0xf]
    %v425 = vld [vmem:[%s3 + $0x20] sm:$0xf]
    %v426 = vld [vmem:[%s3 + $0x24] sm:$0xf]
    %v427 = vld [vmem:[%s3 + $0x28] sm:$0xf]
    %v428 = vld [vmem:[%s3 + $0x2c] sm:$0xf]
    %v429 = vld [vmem:[%s3 + $0x30] sm:$0xf]
    %v430 = vld [vmem:[%s3 + $0x34] sm:$0xf]
    %v431 = vld [vmem:[%s3 + $0x38] sm:$0xf]
    %v432 = vld [vmem:[%s3 + $0x3c] sm:$0xf]
    %v433 = vld [vmem:[%s4] sm:$0x1]
    %v435 = vperm.slane %v433, 0
    %v453 = vunpack.c.l.b16 %v417
    %v454 = vunpack.c.l.b16 %v418
    %v455 = vunpack.c.l.b16 %v419
    %v456 = vunpack.c.l.b16 %v420
    %v457 = vunpack.c.l.b16 %v421
    %v458 = vunpack.c.l.b16 %v422
    %v459 = vunpack.c.l.b16 %v423
    %v460 = vunpack.c.l.b16 %v424
    %v461 = vunpack.c.l.b16 %v425
    %v462 = vunpack.c.l.b16 %v426
    %v463 = vunpack.c.l.b16 %v427
    %v464 = vunpack.c.l.b16 %v428
    %v465 = vunpack.c.l.b16 %v429
    %v466 = vunpack.c.l.b16 %v430
    %v467 = vunpack.c.l.b16 %v431
    %v468 = vunpack.c.l.b16 %v432
    %v469 = vpack.c.b16 %v454, %v453
    %v470 = vpack.c.b16 %v456, %v455
    %v471 = vpack.c.b16 %v458, %v457
    %v472 = vpack.c.b16 %v460, %v459
    %v473 = vpack.c.b16 %v462, %v461
    %v474 = vpack.c.b16 %v464, %v463
    %v475 = vpack.c.b16 %v466, %v465
    %v476 = vpack.c.b16 %v468, %v467
    %485 = vmatpush.bf16.msra.mxu0 %v476
    %486 = vmatpush.bf16.msra.mxu0 %v475
    %487 = vmatpush.bf16.msra.mxu0 %v474
    %488 = vmatpush.bf16.msra.mxu0 %v473
    %489 = vmatpush.bf16.msra.mxu0 %v472
    %490 = vmatpush.bf16.msra.mxu0 %v471
    %491 = vmatpush.bf16.msra.mxu0 %v470
    %492 = vmatpush.bf16.msra.mxu0 %v469
    %493 = vmatmul.bf16.gmra.mxu0 %v416
    %v494 = vpop.f32.mrf.mxu0
    %v495 = vadd.f32 %v435, %v494
    %v496 = vpop.f32.mrf.mxu0
    %497 = vdwg.mxu0
    %498 = vst [vmem:[%s5] sm:$0xff] %v495
  $region29: #{_rsna24_forward.3} parent=0 // pred_fallthru
    _
  // Predicated region
  $region30: #{_rsna24_forward.3} parent=0 // pred_check
    _
  $region31: #{_rsna24_forward.3} parent=0 // pred_check_branch
    %500 = sbr.rel (0) target = $region33
  $region32: #{_rsna24_forward.3} parent=0 // pred_region
    _
  $region33: #{_rsna24_forward.3} parent=0 // pred_fallthru
    _
  // Predicated region
  $region34: #{_rsna24_forward.3} parent=0 // pred_check
    _
  $region35: #{_rsna24_forward.3} parent=0 // pred_check_branch
    %502 = sbr.rel (0) target = $region37
  $region36: #{_rsna24_forward.3} parent=0 // pred_region
    _
  $region37: #{_rsna24_forward.3} parent=0 // pred_fallthru
    _

</llo_original>
